<compile_context>
chip_gen: v7x
topology: tpu7x:2x2x1
jax: 0.10.0
libtpu: 0.0.40
codegen_flags: <defaults>
</compile_context>

<pallas_src>
import functools

import jax
import jax.numpy as jnp
import numpy as np
from jax.experimental import pallas as pl
from jax.experimental.pallas import tpu as pltpu


def _pick_tile_lanes(P, C, itemsize, budget_bytes=4 << 20):
    """Largest pixel tile (in lanes) whose logits slab fits ~budget_bytes and divides P."""
    # sublane granule is 8 for 32-bit, 16 for 16-bit dtypes -> lane granule 1024 / 2048
    granule = 128 * 8 * max(1, 4 // max(1, itemsize))
    max_lanes = max(granule, (budget_bytes // max(1, C * itemsize)) // granule * granule)
    tp = min(P, max_lanes)
    if tp >= P:
        return P
    while P % tp != 0 and tp > granule:
        tp -= granule
    if P % tp != 0:
        # TODO(synk): pad P for awkward sizes instead of falling back to whole-image tiles.
        return P
    return tp


def _fused_kernel(x_ref, t_ref, cnt_ref, nll_ref, *, num_classes):
    """Per image / pixel-tile: per-class label counts and per-class sums of
    -log_softmax(x)[c] over pixels labelled c, accumulated across pixel tiles
    in the resident output blocks (lane-vector partials)."""
    j = pl.program_id(1)

    @pl.when(j == 0)
    def _():
        cnt_ref[...] = jnp.zeros_like(cnt_ref)
        nll_ref[...] = jnp.zeros_like(nll_ref)

    t = t_ref[0]                                          # (tsl, 128) int32 labels

    # pass 1: running max over classes (class axis is leading -> pure VPU max)
    m = x_ref[0, 0].astype(jnp.float32)
    for c in range(1, num_classes):
        m = jnp.maximum(m, x_ref[0, c].astype(jnp.float32))

    # pass 2: sum of exp for the log-sum-exp (exp runs on the EUP slot)
    s = jnp.exp(x_ref[0, 0].astype(jnp.float32) - m)
    for c in range(1, num_classes):
        s = s + jnp.exp(x_ref[0, c].astype(jnp.float32) - m)
    lse = m + jnp.log(s)                                  # (tsl, 128) per-pixel logsumexp

    # pass 3: one compare per class feeds both the count and the masked NLL sum
    cnt_rows, nll_rows = [], []
    for c in range(num_classes):
        hit = t == c
        cnt_rows.append(jnp.sum(jnp.where(hit, 1.0, 0.0), axis=0, keepdims=True))
        nll_c = lse - x_ref[0, c].astype(jnp.float32)     # -log_softmax(x)[c]
        nll_rows.append(jnp.sum(jnp.where(hit, nll_c, 0.0), axis=0, keepdims=True))
    # torch.histc(min=0, max=C): a value equal to the max (== num_classes) lands in
    # the last bin; track it separately so the NLL terms stay untouched.  Values
    # outside [0, num_classes] (e.g. ignore_index=255) are simply never counted.
    cnt_rows.append(jnp.sum(jnp.where(t == num_classes, 1.0, 0.0),
                            axis=0, keepdims=True))

    cnt_ref[0] += jnp.concatenate(cnt_rows, axis=0)       # (C + 1, 128)
    nll_ref[0] += jnp.concatenate(nll_rows, axis=0)       # (C, 128)


def image_based_cross_entropy_loss_2d(inputs, targets, *, num_classes,
                                      ignore_index=255, norm=False,
                                      upper_bound=1.0):
    N, C, H, W = inputs.shape
    assert C == num_classes
    P = H * W
    assert P % 128 == 0, "H*W must be a multiple of 128"
    sl_tot = P // 128

    itemsize = inputs.dtype.itemsize
    tp = _pick_tile_lanes(P, C, itemsize)                 # pixel tile (lanes)
    tsl = tp // 128
    n_tiles = P // tp

    # native dtype (no f32 upcast in the wrapper -> half the HBM traffic for bf16 logits)
    x = inputs.reshape(N, C, sl_tot, 128)
    t = targets.reshape(N, sl_tot, 128).astype(jnp.int32)

    cnt, nll = pl.pallas_call(
        functools.partial(_fused_kernel, num_classes=C),
        grid=(N, n_tiles),
        in_specs=[
            pl.BlockSpec((1, C, tsl, 128), lambda i, j: (i, 0, j, 0)),
            pl.BlockSpec((1, tsl, 128), lambda i, j: (i, j, 0)),
        ],
        out_specs=(
            pl.BlockSpec((1, C + 1, 128), lambda i, j: (i, 0, 0)),
            pl.BlockSpec((1, C, 128), lambda i, j: (i, 0, 0)),
        ),
        out_shape=(
            jax.ShapeDtypeStruct((N, C + 1, 128), jnp.float32),
            jax.ShapeDtypeStruct((N, C, 128), jnp.float32),
        ),
        compiler_params=pltpu.CompilerParams(
            dimension_semantics=("parallel", "arbitrary")),
    )(x, t)

    # ---- tiny glue on (N, C)-sized arrays ----
    cnt = jnp.sum(cnt, axis=-1)                           # (N, C+1) per-image label counts
    nll = jnp.sum(nll, axis=-1)                           # (N, C)  per-image Σ_{t==c} -logp[c]
    class_cnt = cnt[:, :C]                                # counts of t == c
    eq_c = cnt[:, C]                                      # counts of t == C (histc edge)

    # torch.histc(targets, bins=C, min=0, max=C) over the whole batch (batch_weights=True)
    bins = jnp.sum(class_cnt, axis=0)
    bins = bins.at[C - 1].add(jnp.sum(eq_c))
    hist_norm = bins / jnp.sum(bins)
    nz = (bins != 0).astype(jnp.float32)
    if norm:
        # guarded: avoid 0 * inf -> NaN for empty classes
        weights = jnp.where(bins != 0, upper_bound / hist_norm, 0.0) + 1.0
    else:
        weights = nz * upper_bound * (1.0 - hist_norm) + 1.0
    weights = weights.astype(jnp.float32)

    # NLLLoss(weight, reduction='mean', ignore_index): ignored pixels contribute to
    # neither the weighted sum nor the weight normalizer.
    w_eff = weights
    if 0 <= ignore_index < C:
        w_eff = w_eff.at[ignore_index].set(0.0)

    num = jnp.sum(nll * w_eff[None, :], axis=1)           # (N,)
    den = jnp.sum(class_cnt * w_eff[None, :], axis=1)     # (N,)
    loss_i = jnp.where(den > 0.0, num / den, 0.0)         # guard all-ignored images
    return jnp.sum(loss_i)                                # sum of per-image mean losses


def _reference_loss(inputs, targets, num_classes, ignore_index, norm, upper_bound):
    """Pure-JAX mirror of the PyTorch module (for verification)."""
    valid = ((targets >= 0) & (targets <= num_classes)).astype(jnp.float32)
    tb = jnp.minimum(targets, num_classes - 1)
    bins = jnp.sum(jax.nn.one_hot(tb, num_classes) * valid[..., None], axis=(0, 1, 2))
    hist_norm = bins / jnp.sum(bins)
    nz = (bins != 0).astype(jnp.float32)
    if norm:
        weights = jnp.where(bins != 0, upper_bound / hist_norm, 0.0) + 1.0
    else:
        weights = nz * upper_bound * (1.0 - hist_norm) + 1.0
    logp = jax.nn.log_softmax(inputs.astype(jnp.float32), axis=1)
    loss = 0.0
    for i in range(inputs.shape[0]):
        ti = targets[i]
        v = (ti != ignore_index).astype(jnp.float32)
        tc = jnp.clip(ti, 0, num_classes - 1)
        lp_t = jnp.take_along_axis(logp[i], tc[None], axis=0)[0]
        w_t = weights[tc] * v
        loss = loss + jnp.sum(-w_t * lp_t) / jnp.sum(w_t)
    return loss


if __name__ == "__main__":
    key = jax.random.PRNGKey(0)
    k1, k2 = jax.random.split(key)
    N, C, H, W = 2, 4, 16, 16

    inputs = jax.random.normal(k1, (N, C, H, W), dtype=jnp.float32)
    targets = jax.random.randint(k2, (N, H, W), 0, C, dtype=jnp.int32)
    # a few ignore_index pixels, as in real segmentation labels
    targets = targets.at[0, 0, :3].set(255)

    loss = image_based_cross_entropy_loss_2d(
        inputs, targets, num_classes=C, ignore_index=255, norm=False, upper_bound=1.0)
    loss = jax.block_until_ready(loss)

    ref = _reference_loss(inputs, targets, C, 255, False, 1.0)
    np.testing.assert_allclose(np.asarray(loss), np.asarray(ref), rtol=2e-4, atol=1e-5)
    print("KERNEL_OK")
</pallas_src>

<mosaic_0001>
module attributes {stable_mosaic.version = 11 : i64} {
  func.func @_fused_kernel(%arg0: i32, %arg1: i32, %arg2: memref<1x4x2x128xf32, #tpu.memory_space<vmem>>, %arg3: memref<1x2x128xi32, #tpu.memory_space<vmem>>, %arg4: memref<1x5x128xf32, #tpu.memory_space<vmem>>, %arg5: memref<1x4x128xf32, #tpu.memory_space<vmem>>) attributes {dimension_semantics = [#tpu.dimension_semantics<parallel>, #tpu.dimension_semantics<arbitrary>], iteration_bounds = array<i64: 2, 1>, scalar_prefetch = 0 : i64, scratch_operands = 0 : i64, tpu.core_type = #tpu.core_type<tc>, window_params = [{transform_indices = @transform_0, window_bounds = array<i64: 1, 4, 2, 128>}, {transform_indices = @transform_1, window_bounds = array<i64: 1, 2, 128>}, {transform_indices = @transform_2, window_bounds = array<i64: 1, 5, 128>}, {transform_indices = @transform_3, window_bounds = array<i64: 1, 4, 128>}]} {
    %c0_i32 = arith.constant 0 : i32
    %0 = arith.cmpi eq, %arg1, %c0_i32 : i32
    %1 = arith.extui %0 : i1 to i32
    %c0_i32_0 = arith.constant 0 : i32
    %2 = arith.cmpi ne, %1, %c0_i32_0 : i32
    scf.if %2 {
      %cst_83 = arith.constant 0.000000e+00 : f32
      %114 = vector.broadcast %cst_83 : f32 to vector<1x5x128xf32>
      %c0_84 = arith.constant 0 : index
      %c0_85 = arith.constant 0 : index
      %c0_86 = arith.constant 0 : index
      %115 = vector.load %arg4[%c0_84, %c0_85, %c0_86] : memref<1x5x128xf32, #tpu.memory_space<vmem>>, vector<1x5x128xf32>
      tpu.vector_store %arg4[%c0_84, %c0_85, %c0_86], %114 {strides = array<i32>} : memref<1x5x128xf32, #tpu.memory_space<vmem>>, vector<1x5x128xf32>,
      %cst_87 = arith.constant 0.000000e+00 : f32
      %116 = vector.broadcast %cst_87 : f32 to vector<1x4x128xf32>
      %c0_88 = arith.constant 0 : index
      %c0_89 = arith.constant 0 : index
      %c0_90 = arith.constant 0 : index
      %117 = vector.load %arg5[%c0_88, %c0_89, %c0_90] : memref<1x4x128xf32, #tpu.memory_space<vmem>>, vector<1x4x128xf32>
      tpu.vector_store %arg5[%c0_88, %c0_89, %c0_90], %116 {strides = array<i32>} : memref<1x4x128xf32, #tpu.memory_space<vmem>>, vector<1x4x128xf32>,
    } else {
    }
    %c0 = arith.constant 0 : index
    %c0_1 = arith.constant 0 : index
    %c0_2 = arith.constant 0 : index
    %3 = vector.load %arg3[%c0, %c0_1, %c0_2] : memref<1x2x128xi32, #tpu.memory_space<vmem>>, vector<1x2x128xi32>
    %4 = vector.shape_cast %3 : vector<1x2x128xi32> to vector<2x128xi32>
    %c0_3 = arith.constant 0 : index
    %c0_4 = arith.constant 0 : index
    %c0_5 = arith.constant 0 : index
    %c0_6 = arith.constant 0 : index
    %5 = vector.load %arg2[%c0_3, %c0_4, %c0_5, %c0_6] : memref<1x4x2x128xf32, #tpu.memory_space<vmem>>, vector<1x1x2x128xf32>
    %6 = vector.shape_cast %5 : vector<1x1x2x128xf32> to vector<2x128xf32>
    %c0_7 = arith.constant 0 : index
    %c1 = arith.constant 1 : index
    %c0_8 = arith.constant 0 : index
    %c0_9 = arith.constant 0 : index
    %7 = vector.load %arg2[%c0_7, %c1, %c0_8, %c0_9] : memref<1x4x2x128xf32, #tpu.memory_space<vmem>>, vector<1x1x2x128xf32>
    %8 = vector.shape_cast %7 : vector<1x1x2x128xf32> to vector<2x128xf32>
    %9 = arith.maximumf %6, %8 : vector<2x128xf32>
    %c0_10 = arith.constant 0 : index
    %c2 = arith.constant 2 : index
    %c0_11 = arith.constant 0 : index
    %c0_12 = arith.constant 0 : index
    %10 = vector.load %arg2[%c0_10, %c2, %c0_11, %c0_12] : memref<1x4x2x128xf32, #tpu.memory_space<vmem>>, vector<1x1x2x128xf32>
    %11 = vector.shape_cast %10 : vector<1x1x2x128xf32> to vector<2x128xf32>
    %12 = arith.maximumf %9, %11 : vector<2x128xf32>
    %c0_13 = arith.constant 0 : index
    %c3 = arith.constant 3 : index
    %c0_14 = arith.constant 0 : index
    %c0_15 = arith.constant 0 : index
    %13 = vector.load %arg2[%c0_13, %c3, %c0_14, %c0_15] : memref<1x4x2x128xf32, #tpu.memory_space<vmem>>, vector<1x1x2x128xf32>
    %14 = vector.shape_cast %13 : vector<1x1x2x128xf32> to vector<2x128xf32>
    %15 = arith.maximumf %12, %14 : vector<2x128xf32>
    %c0_16 = arith.constant 0 : index
    %c0_17 = arith.constant 0 : index
    %c0_18 = arith.constant 0 : index
    %c0_19 = arith.constant 0 : index
    %16 = vector.load %arg2[%c0_16, %c0_17, %c0_18, %c0_19] : memref<1x4x2x128xf32, #tpu.memory_space<vmem>>, vector<1x1x2x128xf32>
    %17 = vector.shape_cast %16 : vector<1x1x2x128xf32> to vector<2x128xf32>
    %18 = arith.subf %17, %15 : vector<2x128xf32>
    %19 = math.exp %18 : vector<2x128xf32>
    %c0_20 = arith.constant 0 : index
    %c1_21 = arith.constant 1 : index
    %c0_22 = arith.constant 0 : index
    %c0_23 = arith.constant 0 : index
    %20 = vector.load %arg2[%c0_20, %c1_21, %c0_22, %c0_23] : memref<1x4x2x128xf32, #tpu.memory_space<vmem>>, vector<1x1x2x128xf32>
    %21 = vector.shape_cast %20 : vector<1x1x2x128xf32> to vector<2x128xf32>
    %22 = arith.subf %21, %15 : vector<2x128xf32>
    %23 = math.exp %22 : vector<2x128xf32>
    %24 = arith.addf %19, %23 : vector<2x128xf32>
    %c0_24 = arith.constant 0 : index
    %c2_25 = arith.constant 2 : index
    %c0_26 = arith.constant 0 : index
    %c0_27 = arith.constant 0 : index
    %25 = vector.load %arg2[%c0_24, %c2_25, %c0_26, %c0_27] : memref<1x4x2x128xf32, #tpu.memory_space<vmem>>, vector<1x1x2x128xf32>
    %26 = vector.shape_cast %25 : vector<1x1x2x128xf32> to vector<2x128xf32>
    %27 = arith.subf %26, %15 : vector<2x128xf32>
    %28 = math.exp %27 : vector<2x128xf32>
    %29 = arith.addf %24, %28 : vector<2x128xf32>
    %c0_28 = arith.constant 0 : index
    %c3_29 = arith.constant 3 : index
    %c0_30 = arith.constant 0 : index
    %c0_31 = arith.constant 0 : index
    %30 = vector.load %arg2[%c0_28, %c3_29, %c0_30, %c0_31] : memref<1x4x2x128xf32, #tpu.memory_space<vmem>>, vector<1x1x2x128xf32>
    %31 = vector.shape_cast %30 : vector<1x1x2x128xf32> to vector<2x128xf32>
    %32 = arith.subf %31, %15 : vector<2x128xf32>
    %33 = math.exp %32 : vector<2x128xf32>
    %34 = arith.addf %29, %33 : vector<2x128xf32>
    %35 = math.log %34 : vector<2x128xf32>
    %36 = arith.addf %15, %35 : vector<2x128xf32>
    %c0_i32_32 = arith.constant 0 : i32
    %37 = vector.broadcast %c0_i32_32 : i32 to vector<2x128xi32>
    %38 = arith.cmpi eq, %4, %37 : vector<2x128xi32>
    %cst = arith.constant 1.000000e+00 : f32
    %cst_33 = arith.constant 0.000000e+00 : f32
    %39 = vector.broadcast %cst : f32 to vector<2x128xf32>
    %40 = vector.broadcast %cst_33 : f32 to vector<2x128xf32>
    %41 = arith.select %38, %39, %40 : vector<2x128xi1>, vector<2x128xf32>
    %cst_34 = arith.constant dense<0.000000e+00> : vector<128xf32>
    %42 = vector.multi_reduction <add>, %41, %cst_34 [0] : vector<2x128xf32> to vector<128xf32>
    %43 = vector.shape_cast %42 : vector<128xf32> to vector<1x128xf32>
    %c0_35 = arith.constant 0 : index
    %c0_36 = arith.constant 0 : index
    %c0_37 = arith.constant 0 : index
    %c0_38 = arith.constant 0 : index
    %44 = vector.load %arg2[%c0_35, %c0_36, %c0_37, %c0_38] : memref<1x4x2x128xf32, #tpu.memory_space<vmem>>, vector<1x1x2x128xf32>
    %45 = vector.shape_cast %44 : vector<1x1x2x128xf32> to vector<2x128xf32>
    %46 = arith.subf %36, %45 : vector<2x128xf32>
    %cst_39 = arith.constant 0.000000e+00 : f32
    %47 = vector.broadcast %cst_39 : f32 to vector<2x128xf32>
    %48 = arith.select %38, %46, %47 : vector<2x128xi1>, vector<2x128xf32>
    %cst_40 = arith.constant dense<0.000000e+00> : vector<128xf32>
    %49 = vector.multi_reduction <add>, %48, %cst_40 [0] : vector<2x128xf32> to vector<128xf32>
    %50 = vector.shape_cast %49 : vector<128xf32> to vector<1x128xf32>
    %c1_i32 = arith.constant 1 : i32
    %51 = vector.broadcast %c1_i32 : i32 to vector<2x128xi32>
    %52 = arith.cmpi eq, %4, %51 : vector<2x128xi32>
    %cst_41 = arith.constant 1.000000e+00 : f32
    %cst_42 = arith.constant 0.000000e+00 : f32
    %53 = vector.broadcast %cst_41 : f32 to vector<2x128xf32>
    %54 = vector.broadcast %cst_42 : f32 to vector<2x128xf32>
    %55 = arith.select %52, %53, %54 : vector<2x128xi1>, vector<2x128xf32>
    %cst_43 = arith.constant dense<0.000000e+00> : vector<128xf32>
    %56 = vector.multi_reduction <add>, %55, %cst_43 [0] : vector<2x128xf32> to vector<128xf32>
    %57 = vector.shape_cast %56 : vector<128xf32> to vector<1x128xf32>
    %c0_44 = arith.constant 0 : index
    %c1_45 = arith.constant 1 : index
    %c0_46 = arith.constant 0 : index
    %c0_47 = arith.constant 0 : index
    %58 = vector.load %arg2[%c0_44, %c1_45, %c0_46, %c0_47] : memref<1x4x2x128xf32, #tpu.memory_space<vmem>>, vector<1x1x2x128xf32>
    %59 = vector.shape_cast %58 : vector<1x1x2x128xf32> to vector<2x128xf32>
    %60 = arith.subf %36, %59 : vector<2x128xf32>
    %cst_48 = arith.constant 0.000000e+00 : f32
    %61 = vector.broadcast %cst_48 : f32 to vector<2x128xf32>
    %62 = arith.select %52, %60, %61 : vector<2x128xi1>, vector<2x128xf32>
    %cst_49 = arith.constant dense<0.000000e+00> : vector<128xf32>
    %63 = vector.multi_reduction <add>, %62, %cst_49 [0] : vector<2x128xf32> to vector<128xf32>
    %64 = vector.shape_cast %63 : vector<128xf32> to vector<1x128xf32>
    %c2_i32 = arith.constant 2 : i32
    %65 = vector.broadcast %c2_i32 : i32 to vector<2x128xi32>
    %66 = arith.cmpi eq, %4, %65 : vector<2x128xi32>
    %cst_50 = arith.constant 1.000000e+00 : f32
    %cst_51 = arith.constant 0.000000e+00 : f32
    %67 = vector.broadcast %cst_50 : f32 to vector<2x128xf32>
    %68 = vector.broadcast %cst_51 : f32 to vector<2x128xf32>
    %69 = arith.select %66, %67, %68 : vector<2x128xi1>, vector<2x128xf32>
    %cst_52 = arith.constant dense<0.000000e+00> : vector<128xf32>
    %70 = vector.multi_reduction <add>, %69, %cst_52 [0] : vector<2x128xf32> to vector<128xf32>
    %71 = vector.shape_cast %70 : vector<128xf32> to vector<1x128xf32>
    %c0_53 = arith.constant 0 : index
    %c2_54 = arith.constant 2 : index
    %c0_55 = arith.constant 0 : index
    %c0_56 = arith.constant 0 : index
    %72 = vector.load %arg2[%c0_53, %c2_54, %c0_55, %c0_56] : memref<1x4x2x128xf32, #tpu.memory_space<vmem>>, vector<1x1x2x128xf32>
    %73 = vector.shape_cast %72 : vector<1x1x2x128xf32> to vector<2x128xf32>
    %74 = arith.subf %36, %73 : vector<2x128xf32>
    %cst_57 = arith.constant 0.000000e+00 : f32
    %75 = vector.broadcast %cst_57 : f32 to vector<2x128xf32>
    %76 = arith.select %66, %74, %75 : vector<2x128xi1>, vector<2x128xf32>
    %cst_58 = arith.constant dense<0.000000e+00> : vector<128xf32>
    %77 = vector.multi_reduction <add>, %76, %cst_58 [0] : vector<2x128xf32> to vector<128xf32>
    %78 = vector.shape_cast %77 : vector<128xf32> to vector<1x128xf32>
    %c3_i32 = arith.constant 3 : i32
    %79 = vector.broadcast %c3_i32 : i32 to vector<2x128xi32>
    %80 = arith.cmpi eq, %4, %79 : vector<2x128xi32>
    %cst_59 = arith.constant 1.000000e+00 : f32
    %cst_60 = arith.constant 0.000000e+00 : f32
    %81 = vector.broadcast %cst_59 : f32 to vector<2x128xf32>
    %82 = vector.broadcast %cst_60 : f32 to vector<2x128xf32>
    %83 = arith.select %80, %81, %82 : vector<2x128xi1>, vector<2x128xf32>
    %cst_61 = arith.constant dense<0.000000e+00> : vector<128xf32>
    %84 = vector.multi_reduction <add>, %83, %cst_61 [0] : vector<2x128xf32> to vector<128xf32>
    %85 = vector.shape_cast %84 : vector<128xf32> to vector<1x128xf32>
    %c0_62 = arith.constant 0 : index
    %c3_63 = arith.constant 3 : index
    %c0_64 = arith.constant 0 : index
    %c0_65 = arith.constant 0 : index
    %86 = vector.load %arg2[%c0_62, %c3_63, %c0_64, %c0_65] : memref<1x4x2x128xf32, #tpu.memory_space<vmem>>, vector<1x1x2x128xf32>
    %87 = vector.shape_cast %86 : vector<1x1x2x128xf32> to vector<2x128xf32>
    %88 = arith.subf %36, %87 : vector<2x128xf32>
    %cst_66 = arith.constant 0.000000e+00 : f32
    %89 = vector.broadcast %cst_66 : f32 to vector<2x128xf32>
    %90 = arith.select %80, %88, %89 : vector<2x128xi1>, vector<2x128xf32>
    %cst_67 = arith.constant dense<0.000000e+00> : vector<128xf32>
    %91 = vector.multi_reduction <add>, %90, %cst_67 [0] : vector<2x128xf32> to vector<128xf32>
    %92 = vector.shape_cast %91 : vector<128xf32> to vector<1x128xf32>
    %c4_i32 = arith.constant 4 : i32
    %93 = vector.broadcast %c4_i32 : i32 to vector<2x128xi32>
    %94 = arith.cmpi eq, %4, %93 : vector<2x128xi32>
    %cst_68 = arith.constant 1.000000e+00 : f32
    %cst_69 = arith.constant 0.000000e+00 : f32
    %95 = vector.broadcast %cst_68 : f32 to vector<2x128xf32>
    %96 = vector.broadcast %cst_69 : f32 to vector<2x128xf32>
    %97 = arith.select %94, %95, %96 : vector<2x128xi1>, vector<2x128xf32>
    %cst_70 = arith.constant dense<0.000000e+00> : vector<128xf32>
    %98 = vector.multi_reduction <add>, %97, %cst_70 [0] : vector<2x128xf32> to vector<128xf32>
    %99 = vector.shape_cast %98 : vector<128xf32> to vector<1x128xf32>
    %c0_71 = arith.constant 0 : index
    %c0_72 = arith.constant 0 : index
    %c0_73 = arith.constant 0 : index
    %100 = vector.load %arg4[%c0_71, %c0_72, %c0_73] : memref<1x5x128xf32, #tpu.memory_space<vmem>>, vector<1x5x128xf32>
    %101 = vector.shape_cast %100 : vector<1x5x128xf32> to vector<5x128xf32>
    %102 = tpu.concatenate %43, %57, %71, %85, %99 in 0 : vector<1x128xf32>, vector<1x128xf32>, vector<1x128xf32>, vector<1x128xf32>, vector<1x128xf32> -> vector<5x128xf32>
    %103 = arith.addf %101, %102 : vector<5x128xf32>
    %c0_74 = arith.constant 0 : index
    %c0_75 = arith.constant 0 : index
    %c0_76 = arith.constant 0 : index
    %104 = vector.load %arg4[%c0_74, %c0_75, %c0_76] : memref<1x5x128xf32, #tpu.memory_space<vmem>>, vector<1x5x128xf32>
    %105 = vector.shape_cast %104 : vector<1x5x128xf32> to vector<5x128xf32>
    %106 = vector.shape_cast %103 : vector<5x128xf32> to vector<1x5x128xf32>
    tpu.vector_store %arg4[%c0_74, %c0_75, %c0_76], %106 {strides = array<i32>} : memref<1x5x128xf32, #tpu.memory_space<vmem>>, vector<1x5x128xf32>,
    %c0_77 = arith.constant 0 : index
    %c0_78 = arith.constant 0 : index
    %c0_79 = arith.constant 0 : index
    %107 = vector.load %arg5[%c0_77, %c0_78, %c0_79] : memref<1x4x128xf32, #tpu.memory_space<vmem>>, vector<1x4x128xf32>
    %108 = vector.shape_cast %107 : vector<1x4x128xf32> to vector<4x128xf32>
    %109 = tpu.concatenate %50, %64, %78, %92 in 0 : vector<1x128xf32>, vector<1x128xf32>, vector<1x128xf32>, vector<1x128xf32> -> vector<4x128xf32>
    %110 = arith.addf %108, %109 : vector<4x128xf32>
    %c0_80 = arith.constant 0 : index
    %c0_81 = arith.constant 0 : index
    %c0_82 = arith.constant 0 : index
    %111 = vector.load %arg5[%c0_80, %c0_81, %c0_82] : memref<1x4x128xf32, #tpu.memory_space<vmem>>, vector<1x4x128xf32>
    %112 = vector.shape_cast %111 : vector<1x4x128xf32> to vector<4x128xf32>
    %113 = vector.shape_cast %110 : vector<4x128xf32> to vector<1x4x128xf32>
    tpu.vector_store %arg5[%c0_80, %c0_81, %c0_82], %113 {strides = array<i32>} : memref<1x4x128xf32, #tpu.memory_space<vmem>>, vector<1x4x128xf32>,
    return
  }
  func.func @transform_0(%arg0: i32, %arg1: i32) -> (i32, i32, i32, i32) {
    %c0_i32 = arith.constant 0 : i32
    %c0_i32_0 = arith.constant 0 : i32
    %c0_i32_1 = arith.constant 0 : i32
    return %arg0, %c0_i32, %arg1, %c0_i32_0 : i32, i32, i32, i32
  }
  func.func @transform_1(%arg0: i32, %arg1: i32) -> (i32, i32, i32) {
    %c0_i32 = arith.constant 0 : i32
    %c0_i32_0 = arith.constant 0 : i32
    return %arg0, %arg1, %c0_i32 : i32, i32, i32
  }
  func.func @transform_2(%arg0: i32, %arg1: i32) -> (i32, i32, i32) {
    %c0_i32 = arith.constant 0 : i32
    %c0_i32_0 = arith.constant 0 : i32
    %c0_i32_1 = arith.constant 0 : i32
    return %arg0, %c0_i32, %c0_i32_0 : i32, i32, i32
  }
  func.func @transform_3(%arg0: i32, %arg1: i32) -> (i32, i32, i32) {
    %c0_i32 = arith.constant 0 : i32
    %c0_i32_0 = arith.constant 0 : i32
    %c0_i32_1 = arith.constant 0 : i32
    return %arg0, %c0_i32, %c0_i32_0 : i32, i32, i32
  }
}

</mosaic_0001>

<llo_original>
// kernel: tpu_custom_call.1
$region0: #{tpu_custom_call.1}
  #allocation0 [shape = 'u32[]', space=smem, size = 0x4, offset = 0x4, fixed_abs, tag = 'smem constant byte address 0x4 - core index']
  #allocation1 [shape = 'u32[144,128]{1,0:T(1,128)}', space=vmem, size = 0x12000, scoped, tag = 'internal scratch']
  %s0 = inlined_call_operand.hbm [shape: f32[2,4,2,128], index: 0, kind: input, shape index: {}]
  %s1 = inlined_call_operand.hbm [shape: s32[2,2,128], index: 1, kind: input, shape index: {}]
  %s2 = inlined_call_operand.vmem [shape: f32[2,5,128], index: 2, kind: output, shape index: {0}]
  %s3 = inlined_call_operand.hbm [shape: f32[2,4,128], index: 3, kind: output, shape index: {1}]
  %4 = xla_tuple %s2, %s3
  %s5 = sld [smem:[#allocation0]]
  $region61: #{tpu_custom_call.1} parent=0
    _
  %s7 = ssub.s32 1, %s5
  %s8 = scalar_select 0, %s7, %s5
  $region1: #{tpu_custom_call.1} parent=0
    #allocation2 [shape = 'u8[8192]{0}', space=vmem, size = 0x2000, scoped, tag = 'input window, operand 0']
    #allocation3 [shape = 's32[2]{0}', space=sflag, size = 0x8, scoped, tag = 'scoped memory for tpu_custom_call.1']
    #allocation4 [shape = 's32[2]{0}', space=sflag, size = 0x8, scoped, tag = 'scoped memory for tpu_custom_call.1']
    #allocation5 [shape = 'u8[2048]{0}', space=vmem, size = 0x800, scoped, tag = 'input window, operand 1']
    #allocation6 [shape = 's32[2]{0}', space=sflag, size = 0x8, scoped, tag = 'scoped memory for tpu_custom_call.1']
    #allocation7 [shape = 'u8[4096]{0}', space=vmem, size = 0x1000, scoped, tag = 'output window, operand 1']
    %9 = vsyncpa [#allocation3], 0
    %s10 = scalar_lea.sflag [#allocation3], 1
    %11 = vsyncpa %s10, 0
    %12 = vsyncpa [#allocation6], 0
    %s13 = scalar_lea.sflag [#allocation6], 1
    %14 = vsyncpa %s13, 0
    %15 = vsyncpa [#allocation4], 0
    %s16 = scalar_lea.sflag [#allocation4], 1
    %17 = vsyncpa %s16, 0
    loop: start=0, step=1, limit=4
    $region2: #{tpu_custom_call.1} parent=1 // loop_pre_header
      _
    $region3: #{tpu_custom_call.1} parent=1 // loop_header
      %s19 = sphi 0, %s23
      %p20 = scmp.ge.s32.totalorder %s19, 4
      %s26 = sphi 0, %s38
      %s27 = sphi 0, %s34
      %s28 = sphi 0, %s26
      %s29 = sphi 0, %s27
      %s30 = sphi 0, %s28
      %s31 = sphi 0, %s29
      %s43 = sphi 0, %s45
      %s46 = sphi 0, %s43
      %s47 = sphi 0, %s46
      %s63 = sphi 0, %s47
      %s71 = sphi 0, %s73
      %s74 = sphi 0, %s71
      %s75 = sphi 0, %s74
      %s91 = sphi 0, %s75
      %s97 = sphi 0, %s99
      %s100 = sphi 0, %s97
      %s101 = sphi 0, %s100
      %s117 = sphi 0, %s101
      %s123 = sphi 0, %s125
      %s126 = sphi 0, %s123
      %s127 = sphi 0, %s126
      %s143 = sphi 0, %s127
    $region4: #{tpu_custom_call.1} parent=1 // loop_header_branch
      %22 = sbr.rel (%p20) target = $region8
    $region5: #{tpu_custom_call.1} parent=1 // loop_body
      %s24 = ssub.s32 %s19, 1
      %s25 = ssub.s32 %s19, 2
      %s32 = sadd.s32 1, %s27
      %p33 = scmp.ge.s32.totalorder %s32, 1
      %s34 = scalar_select %p33, 0, %s32
      %s35 = sadd.s32 1, %s26
      %s36 = scalar_select %p33, %s35, %s26
      %p37 = scmp.ge.s32.totalorder %s36, 2
      %s38 = scalar_select %p37, 0, %s36
      %s39 = ssub.s32 %s26, %s38
      %s40 = ssub.s32 %s27, %s34
      %s41 = sor.u32 %s39, %s40
      %p42 = scmp.eq.s32.totalorder %s41, 0
      %s44 = sadd.s32 %s43, 1
      %s45 = scalar_select %p42, %s43, %s44
      %p48 = pneg %p42
      %p49 = scmp.eq.s32.totalorder %s19, 1
      %p50 = por %p48, %p49
      %p51 = scmp.ne.s32.totalorder %s43, %s46
      %p52 = scmp.eq.s32.totalorder %s19, 0
      %p53 = por %p51, %p52
      %p54 = scmp.ne.s32.totalorder %s43, %s46
      %p55 = scmp.eq.s32.totalorder %s24, 1
      %p56 = por %p54, %p55
      %p57 = scmp.ne.s32.totalorder %s46, %s47
      %p58 = scmp.eq.s32.totalorder %s24, 0
      %p59 = por %p57, %p58
      %p60 = scmp.ne.s32.totalorder %s46, %s47
      %p61 = scmp.eq.s32.totalorder %s25, 1
      %p62 = por %p60, %p61
      %p64 = scmp.ne.s32.totalorder %s47, %s63
      %p65 = scmp.eq.s32.totalorder %s25, 0
      %p66 = por %p64, %p65
      %s67 = ssub.s32 %s26, %s38
      %s68 = ssub.s32 %s27, %s34
      %s69 = sor.u32 %s67, %s68
      %p70 = scmp.eq.s32.totalorder %s69, 0
      %s72 = sadd.s32 %s71, 1
      %s73 = scalar_select %p70, %s71, %s72
      %p76 = pneg %p70
      %p77 = scmp.eq.s32.totalorder %s19, 1
      %p78 = por %p76, %p77
      %p79 = scmp.ne.s32.totalorder %s71, %s74
      %p80 = scmp.eq.s32.totalorder %s19, 0
      %p81 = por %p79, %p80
      %p82 = scmp.ne.s32.totalorder %s71, %s74
      %p83 = scmp.eq.s32.totalorder %s24, 1
      %p84 = por %p82, %p83
      %p85 = scmp.ne.s32.totalorder %s74, %s75
      %p86 = scmp.eq.s32.totalorder %s24, 0
      %p87 = por %p85, %p86
      %p88 = scmp.ne.s32.totalorder %s74, %s75
      %p89 = scmp.eq.s32.totalorder %s25, 1
      %p90 = por %p88, %p89
      %p92 = scmp.ne.s32.totalorder %s75, %s91
      %p93 = scmp.eq.s32.totalorder %s25, 0
      %p94 = por %p92, %p93
      %s95 = ssub.s32 %s26, %s38
      %p96 = scmp.eq.s32.totalorder %s95, 0
      %s98 = sadd.s32 %s97, 1
      %s99 = scalar_select %p96, %s97, %s98
      %p102 = pneg %p96
      %p103 = scmp.eq.s32.totalorder %s19, 1
      %p104 = por %p102, %p103
      %p105 = scmp.ne.s32.totalorder %s97, %s100
      %p106 = scmp.eq.s32.totalorder %s19, 0
      %p107 = por %p105, %p106
      %p108 = scmp.ne.s32.totalorder %s97, %s100
      %p109 = scmp.eq.s32.totalorder %s24, 1
      %p110 = por %p108, %p109
      %p111 = scmp.ne.s32.totalorder %s100, %s101
      %p112 = scmp.eq.s32.totalorder %s24, 0
      %p113 = por %p111, %p112
      %p114 = scmp.ne.s32.totalorder %s100, %s101
      %p115 = scmp.eq.s32.totalorder %s25, 1
      %p116 = por %p114, %p115
      %p118 = scmp.ne.s32.totalorder %s101, %s117
      %p119 = scmp.eq.s32.totalorder %s25, 0
      %p120 = por %p118, %p119
      %s121 = ssub.s32 %s26, %s38
      %p122 = scmp.eq.s32.totalorder %s121, 0
      %s124 = sadd.s32 %s123, 1
      %s125 = scalar_select %p122, %s123, %s124
      %p128 = pneg %p122
      %p129 = scmp.eq.s32.totalorder %s19, 1
      %p130 = por %p128, %p129
      %p131 = scmp.ne.s32.totalorder %s123, %s126
      %p132 = scmp.eq.s32.totalorder %s19, 0
      %p133 = por %p131, %p132
      %p134 = scmp.ne.s32.totalorder %s123, %s126
      %p135 = scmp.eq.s32.totalorder %s24, 1
      %p136 = por %p134, %p135
      %p137 = scmp.ne.s32.totalorder %s126, %s127
      %p138 = scmp.eq.s32.totalorder %s24, 0
      %p139 = por %p137, %p138
      %p140 = scmp.ne.s32.totalorder %s126, %s127
      %p141 = scmp.eq.s32.totalorder %s25, 1
      %p142 = por %p140, %p141
      %p144 = scmp.ne.s32.totalorder %s127, %s143
      %p145 = scmp.eq.s32.totalorder %s25, 0
      %p146 = por %p144, %p145
      %p147 = scmp.le.s32.totalorder 1, %s19
      %p148 = scmp.lt.s32.totalorder %s19, 3
      %p149 = pnand %p147, %p148
      %p150 = pneg %p149
      // Predicated region
      $region9: #{tpu_custom_call.1} parent=5 // pred_check
        _
      $region10: #{tpu_custom_call.1} parent=5 // pred_check_branch
        %152 = sbr.rel (%p149) target = $region12
      $region11: #{tpu_custom_call.1} parent=5 // pred_region
        %s153 = ssub.s32 %s19, 1
      $region12: #{tpu_custom_call.1} parent=5 // pred_fallthru
        _
      %p154 = scmp.lt.s32.totalorder %s19, 2
      // Predicated region
      $region13: #{tpu_custom_call.1} parent=5 // pred_check
        %p155 = pneg %p154
      $region14: #{tpu_custom_call.1} parent=5 // pred_check_branch
        %157 = sbr.rel (%p155) target = $region16
      $region15: #{tpu_custom_call.1} parent=5 // pred_region
        // Predicated region
        $region17: #{tpu_custom_call.1} parent=15 // pred_check
          %p158 = pneg %p53
        $region18: #{tpu_custom_call.1} parent=15 // pred_check_branch
          %160 = sbr.rel (%p158) target = $region20
        $region19: #{tpu_custom_call.1} parent=15 // pred_region
          %s161 = sand.u32 %s43, 1
          %s162 = scalar_lea.sflag [#allocation3], %s161
          %s163 = sand.u32 %s43, 1
          %s164 = smul.addr %s163, 8
          %s165 = scalar_lea.vmem [#allocation2], %s164
          %s167 = ssub.s32 128, 128
          %168 = vsyncadd %s162, %s167
          %s169 = smul.addr %s26, 4
          %s170 = sadd.s32 %s27, %s169
          %s171 = smul.addr %s170, 32
          %s172 = scalar_lea.hbm %s0, %s171
          %s173 = sshll.u32 %s165, 4
          %s174 = int_to_ptr.vmem [resolvable:$true] %s173
          %179 = dma.hbm_to_vmem [thread:$0]  %s172, 128, %s174, %s162, 32, 32, 2
        $region20: #{tpu_custom_call.1} parent=15 // pred_fallthru
          _
        // Predicated region
        $region21: #{tpu_custom_call.1} parent=15 // pred_check
          %p180 = pneg %p81
        $region22: #{tpu_custom_call.1} parent=15 // pred_check_branch
          %182 = sbr.rel (%p180) target = $region24
        $region23: #{tpu_custom_call.1} parent=15 // pred_region
          %s183 = sand.u32 %s71, 1
          %s184 = scalar_lea.sflag [#allocation6], %s183
          %s185 = sand.u32 %s71, 1
          %s186 = smul.addr %s185, 2
          %s187 = scalar_lea.vmem [#allocation5], %s186
          %s189 = ssub.s32 32, 32
          %190 = vsyncadd %s184, %s189
          %s191 = sadd.s32 %s27, %s26
          %s192 = smul.addr %s191, 32
          %s193 = scalar_lea.hbm %s1, %s192
          %s195 = sshll.u32 %s187, 4
          %s196 = int_to_ptr.vmem [resolvable:$true] %s195
          %198 = dma.hbm_to_vmem [thread:$0]  %s193, 32, %s196, %s184
        $region24: #{tpu_custom_call.1} parent=15 // pred_fallthru
          _
      $region16: #{tpu_custom_call.1} parent=5 // pred_fallthru
        _
      %p199 = scmp.le.s32.totalorder 1, %s19
      %p200 = scmp.lt.s32.totalorder %s19, 3
      %p201 = pnand %p199, %p200
      %p202 = pneg %p201
      // Predicated region
      $region25: #{tpu_custom_call.1} parent=5 // pred_check
        _
      $region26: #{tpu_custom_call.1} parent=5 // pred_check_branch
        %204 = sbr.rel (%p201) target = $region28
      $region27: #{tpu_custom_call.1} parent=5 // pred_region
        %s205 = ssub.s32 %s19, 1
        %s206 = sand.u32 %s46, 1
        %s207 = scalar_lea.sflag [#allocation3], %s206
        %s208 = sand.u32 %s46, 1
        %s209 = smul.addr %s208, 8
        %s210 = scalar_lea.vmem [#allocation2], %s209
        // Predicated region
        $region29: #{tpu_custom_call.1} parent=27 // pred_check
          %p211 = pneg %p59
        $region30: #{tpu_custom_call.1} parent=27 // pred_check_branch
          %213 = sbr.rel (%p211) target = $region32
        $region31: #{tpu_custom_call.1} parent=27 // pred_region
          %214 = dma.done %s207, 128
        $region32: #{tpu_custom_call.1} parent=27 // pred_fallthru
          _
        %s215 = sand.u32 %s74, 1
        %s216 = scalar_lea.sflag [#allocation6], %s215
        %s217 = sand.u32 %s74, 1
        %s218 = smul.addr %s217, 2
        %s219 = scalar_lea.vmem [#allocation5], %s218
        // Predicated region
        $region33: #{tpu_custom_call.1} parent=27 // pred_check
          %p220 = pneg %p87
        $region34: #{tpu_custom_call.1} parent=27 // pred_check_branch
          %222 = sbr.rel (%p220) target = $region36
        $region35: #{tpu_custom_call.1} parent=27 // pred_region
          %223 = dma.done %s216, 32
        $region36: #{tpu_custom_call.1} parent=27 // pred_fallthru
          _
        %s224 = sand.u32 %s46, 1
        %s225 = scalar_lea.sflag [#allocation3], %s224
        %s226 = sand.u32 %s46, 1
        %s227 = smul.addr %s226, 8
        %s228 = scalar_lea.vmem [#allocation2], %s227
        %p229 = pneg %p59
        %p230 = pneg %p56
        %s231 = sand.u32 %s74, 1
        %s232 = scalar_lea.sflag [#allocation6], %s231
        %s233 = sand.u32 %s74, 1
        %s234 = smul.addr %s233, 2
        %s235 = scalar_lea.vmem [#allocation5], %s234
        %p236 = pneg %p87
        %p237 = pneg %p84
        %p238 = pneg %p113
        %p239 = pneg %p110
        %p240 = scmp.lt.s32.totalorder %s28, 1
        %s241 = scalar_select %p240, %s28, 1
        %s242 = smul.addr %s241, 8
        %s243 = scalar_lea.vmem %s2, %s242
        %p244 = pneg %p139
        %p245 = pneg %p136
        %s246 = sand.u32 %s126, 1
        %s247 = scalar_lea.sflag [#allocation4], %s246
        %s248 = sand.u32 %s126, 1
        %s249 = smul.addr %s248, 4
        %s250 = scalar_lea.vmem [#allocation7], %s249
        %p251 = scmp.lt.s32.totalorder %s28, 1
        %s252 = scalar_select %p251, %s28, 1
        %s253 = smul.addr %s252, 8
        %s254 = scalar_lea.vmem %s2, %s253
        %p255 = scmp.eq.s32.totalorder %s29, 0
        // Predicated region
        $region37: #{tpu_custom_call.1} parent=27 // pred_check
          %p256 = pneg %p255
        $region38: #{tpu_custom_call.1} parent=27 // pred_check_branch
          %258 = sbr.rel (%p256) target = $region40
        $region39: #{tpu_custom_call.1} parent=27 // pred_region
          %259 = vst [vmem:[%s254] sm:$0x1f] 0.0
          %260 = vst [vmem:[%s250] sm:$0xf] 0.0
        $region40: #{tpu_custom_call.1} parent=27 // pred_fallthru
          _
        %v261 = vld [vmem:[%s219] sm:$0x3]
        %v262 = vld [vmem:[%s210] sm:$0x3]
        %s263 = scalar_lea.vmem %s210, 2 [#allocation2]
        %v264 = vld [vmem:[%s263] sm:$0x3]
        %v265 = vmax.f32 %v262, %v264
        %s266 = scalar_lea.vmem %s210, 4 [#allocation2]
        %v267 = vld [vmem:[%s266] sm:$0x3]
        %v268 = vmax.f32 %v265, %v267
        %s269 = scalar_lea.vmem %s210, 6 [#allocation2]
        %v270 = vld [vmem:[%s269] sm:$0x3]
        %v271 = vmax.f32 %v268, %v270
        %v272 = vsub.f32 %v262, %v271
        %v273 = vmul.f32 %v272, 1.442695
        %v274 = vpow.pop %v273
        %v275 = vsub.f32 %v264, %v271
        %v276 = vmul.f32 %v275, 1.442695
        %v277 = vpow.pop %v276
        %v278 = vadd.f32 %v274, %v277
        %v279 = vsub.f32 %v267, %v271
        %v280 = vmul.f32 %v279, 1.442695
        %v281 = vpow.pop %v280
        %v282 = vadd.f32 %v278, %v281
        %v283 = vsub.f32 %v270, %v271
        %v284 = vmul.f32 %v283, 1.442695
        %v285 = vpow.pop %v284
        %v286 = vadd.f32 %v282, %v285
        %v287 = vlog2.pop %v286
        %v288 = vmul.f32 %v287, 0.6931472
        %v289 = vadd.f32 %v271, %v288
        %vm290 = vcmp.eq.s32.totalorder %v261, 0
        %v291 = vsel %vm290, 1.0, 0.0
        %vm292 = vcmask 1041408
        %v293 = vsel %vm292, %v291, 0.0
        %v294 = vrot.slane %v293, 4
        %v295 = vadd.f32 %v293, %v294
        %v296 = vrot.slane %v295, 2
        %v297 = vadd.f32 %v295, %v296
        %v298 = vrot.slane %v297, 1
        %v299 = vadd.f32 %v297, %v298
        %v300 = vsub.f32 %v289, %v262
        %v301 = vsel %vm290, %v300, 0.0
        %v302 = vsel %vm292, %v301, 0.0
        %v303 = vrot.slane %v302, 4
        %v304 = vadd.f32 %v302, %v303
        %v305 = vrot.slane %v304, 2
        %v306 = vadd.f32 %v304, %v305
        %v307 = vrot.slane %v306, 1
        %v308 = vadd.f32 %v306, %v307
        %vm309 = vcmp.eq.s32.totalorder %v261, 1
        %v310 = vsel %vm309, 1.0, 0.0
        %v311 = vsel %vm292, %v310, 0.0
        %v312 = vrot.slane %v311, 4
        %v313 = vadd.f32 %v311, %v312
        %v314 = vrot.slane %v313, 2
        %v315 = vadd.f32 %v313, %v314
        %v316 = vrot.slane %v315, 1
        %v317 = vadd.f32 %v315, %v316
        %v318 = vsub.f32 %v289, %v264
        %v319 = vsel %vm309, %v318, 0.0
        %v320 = vsel %vm292, %v319, 0.0
        %v321 = vrot.slane %v320, 4
        %v322 = vadd.f32 %v320, %v321
        %v323 = vrot.slane %v322, 2
        %v324 = vadd.f32 %v322, %v323
        %v325 = vrot.slane %v324, 1
        %v326 = vadd.f32 %v324, %v325
        %vm327 = vcmp.eq.s32.totalorder %v261, 2
        %v328 = vsel %vm327, 1.0, 0.0
        %v329 = vsel %vm292, %v328, 0.0
        %v330 = vrot.slane %v329, 4
        %v331 = vadd.f32 %v329, %v330
        %v332 = vrot.slane %v331, 2
        %v333 = vadd.f32 %v331, %v332
        %v334 = vrot.slane %v333, 1
        %v335 = vadd.f32 %v333, %v334
        %v336 = vsub.f32 %v289, %v267
        %v337 = vsel %vm327, %v336, 0.0
        %v338 = vsel %vm292, %v337, 0.0
        %v339 = vrot.slane %v338, 4
        %v340 = vadd.f32 %v338, %v339
        %v341 = vrot.slane %v340, 2
        %v342 = vadd.f32 %v340, %v341
        %v343 = vrot.slane %v342, 1
        %v344 = vadd.f32 %v342, %v343
        %vm345 = vcmp.eq.s32.totalorder %v261, 3
        %v346 = vsel %vm345, 1.0, 0.0
        %v347 = vsel %vm292, %v346, 0.0
        %v348 = vrot.slane %v347, 4
        %v349 = vadd.f32 %v347, %v348
        %v350 = vrot.slane %v349, 2
        %v351 = vadd.f32 %v349, %v350
        %v352 = vrot.slane %v351, 1
        %v353 = vadd.f32 %v351, %v352
        %v354 = vsub.f32 %v289, %v270
        %v355 = vsel %vm345, %v354, 0.0
        %v356 = vsel %vm292, %v355, 0.0
        %v357 = vrot.slane %v356, 4
        %v358 = vadd.f32 %v356, %v357
        %v359 = vrot.slane %v358, 2
        %v360 = vadd.f32 %v358, %v359
        %v361 = vrot.slane %v360, 1
        %v362 = vadd.f32 %v360, %v361
        %vm363 = vcmp.eq.s32.totalorder %v261, 4
        %v364 = vsel %vm363, 1.0, 0.0
        %v365 = vsel %vm292, %v364, 0.0
        %v366 = vrot.slane %v365, 4
        %v367 = vadd.f32 %v365, %v366
        %v368 = vrot.slane %v367, 2
        %v369 = vadd.f32 %v367, %v368
        %v370 = vrot.slane %v369, 1
        %v371 = vadd.f32 %v369, %v370
        %v372 = vld [vmem:[%s254] sm:$0x1f]
        %vm373 = vcmask 1040384
        %v374 = vsel %vm373, %v299, %v317
        %v375 = vsel %vm292, %v374, %v335
        %vm376 = vcmask 1042432
        %v377 = vsel %vm376, %v375, %v353
        %vm378 = vcmask 1043456
        %v379 = vsel %vm378, %v377, %v371
        %v380 = vadd.f32 %v372, %v379
        %381 = vst [vmem:[%s254] sm:$0x1f] %v380
        %v382 = vld [vmem:[%s250] sm:$0xf]
        %v383 = vsel %vm373, %v308, %v326
        %v384 = vsel %vm292, %v383, %v344
        %v385 = vsel %vm376, %v384, %v362
        %v386 = vadd.f32 %v382, %v385
        %387 = vst [vmem:[%s250] sm:$0xf] %v386
        %p388 = scmp.lt.s32.totalorder %s28, 1
        %s389 = scalar_select %p388, %s28, 1
        %s390 = smul.addr %s389, 8
        %s391 = scalar_lea.vmem %s2, %s390
        %s392 = sand.u32 %s126, 1
        %s393 = scalar_lea.sflag [#allocation4], %s392
        %s394 = sand.u32 %s126, 1
        %s395 = smul.addr %s394, 4
        %s396 = scalar_lea.vmem [#allocation7], %s395
        // Predicated region
        $region41: #{tpu_custom_call.1} parent=27 // pred_check
          %p397 = pneg %p110
        $region42: #{tpu_custom_call.1} parent=27 // pred_check_branch
          %399 = sbr.rel (%p397) target = $region44
        $region43: #{tpu_custom_call.1} parent=27 // pred_region
          _
        $region44: #{tpu_custom_call.1} parent=27 // pred_fallthru
          _
        // Predicated region
        $region45: #{tpu_custom_call.1} parent=27 // pred_check
          %p400 = pneg %p136
        $region46: #{tpu_custom_call.1} parent=27 // pred_check_branch
          %402 = sbr.rel (%p400) target = $region48
        $region47: #{tpu_custom_call.1} parent=27 // pred_region
          %s404 = ssub.s32 64, 64
          %405 = vsyncadd %s393, %s404
          %s406 = smul.addr %s28, 64
          %s407 = scalar_lea.hbm %s3, %s406
          %s409 = sshll.u32 %s396, 4
          %s410 = int_to_ptr.vmem [resolvable:$true] %s409
          %412 = dma.vmem_to_hbm [thread:$0]  %s410, 64, %s407, %s393
        $region48: #{tpu_custom_call.1} parent=27 // pred_fallthru
          _
      $region28: #{tpu_custom_call.1} parent=5 // pred_fallthru
        _
      %p413 = scmp.le.s32.totalorder 2, %s19
      // Predicated region
      $region49: #{tpu_custom_call.1} parent=5 // pred_check
        %p414 = pneg %p413
      $region50: #{tpu_custom_call.1} parent=5 // pred_check_branch
        %416 = sbr.rel (%p414) target = $region52
      $region51: #{tpu_custom_call.1} parent=5 // pred_region
        %s417 = ssub.s32 %s19, 2
        // Predicated region
        $region53: #{tpu_custom_call.1} parent=51 // pred_check
          %p418 = pneg %p116
        $region54: #{tpu_custom_call.1} parent=51 // pred_check_branch
          %420 = sbr.rel (%p418) target = $region56
        $region55: #{tpu_custom_call.1} parent=51 // pred_region
          %p421 = scmp.lt.s32.totalorder %s30, 1
          %s422 = scalar_select %p421, %s30, 1
          %s423 = smul.addr %s422, 8
          %s424 = scalar_lea.vmem %s2, %s423
        $region56: #{tpu_custom_call.1} parent=51 // pred_fallthru
          _
        // Predicated region
        $region57: #{tpu_custom_call.1} parent=51 // pred_check
          %p425 = pneg %p142
        $region58: #{tpu_custom_call.1} parent=51 // pred_check_branch
          %427 = sbr.rel (%p425) target = $region60
        $region59: #{tpu_custom_call.1} parent=51 // pred_region
          %s428 = sand.u32 %s127, 1
          %s429 = scalar_lea.sflag [#allocation4], %s428
          %s430 = sand.u32 %s127, 1
          %s431 = smul.addr %s430, 4
          %s432 = scalar_lea.vmem [#allocation7], %s431
          %433 = dma.done %s429, 64
        $region60: #{tpu_custom_call.1} parent=51 // pred_fallthru
          _
      $region52: #{tpu_custom_call.1} parent=5 // pred_fallthru
        _
    $region6: #{tpu_custom_call.1} parent=1 // loop_footer
      %s23 = sadd.s32 1, %s19
    $region7: #{tpu_custom_call.1} parent=1 // loop_footer_branch
      %18 = sbr.rel target = $region3
    $region8: #{tpu_custom_call.1} parent=1 // loop_exit
      _
    %434 = vsyncpa [#allocation3], 1
    %s435 = scalar_lea.sflag [#allocation3], 1
    %436 = vsyncpa %s435, 1
    %437 = vsyncpa [#allocation6], 1
    %s438 = scalar_lea.sflag [#allocation6], 1
    %439 = vsyncpa %s438, 1
    %440 = vsyncpa [#allocation4], 1
    %s441 = scalar_lea.sflag [#allocation4], 1
    %442 = vsyncpa %s441, 1

</llo_original>
